<compile_context>
chip_gen: v6e
topology: v6e:2x2x1
jax: 0.10.0
libtpu: 0.0.40
codegen_flags: <defaults>
</compile_context>

<pallas_src>
import math

import jax
import jax.numpy as jnp
from jax.experimental import pallas as pl
from jax.experimental.pallas import tpu as pltpu


def _round_up(a: int, b: int) -> int:
    return -(-a // b) * b


def _make_kernel(n_splits: int):
    """Kernel over one slab-row tile.  n_splits=2 exploits the block-diagonal
    structure of kron(I_P, W) (two identical kron(I_{P/2}, W) super-blocks) to
    halve MXU FLOPs; n_splits=1 is the dense fallback (P odd)."""

    def kernel(x_ref, w1_ref, b1_ref, w2_ref, b2_ref, o_ref):
        w1 = w1_ref[...]          # (Pk*c_in, Pk*c_hidden), compute dtype
        b1 = b1_ref[...]          # (1, Pk*c_hidden), f32
        w2 = w2_ref[...]          # (Pk*c_hidden, Pk*c_out), compute dtype
        b2 = b2_ref[...]          # (1, Pk*c_out), f32
        # Cast x to the compute dtype *inside* the kernel (no standalone XLA
        # convert pass over x in HBM); MXU accumulation stays in f32.
        x = x_ref[...].astype(w1.dtype)
        k_in = w1.shape[0]
        ys = []
        for s in range(n_splits):
            xs = x[:, s * k_in:(s + 1) * k_in]
            h = jnp.dot(xs, w1, preferred_element_type=jnp.float32)
            h = jnp.maximum(h + b1, 0.0)
            y = jnp.dot(h.astype(w2.dtype), w2,
                        preferred_element_type=jnp.float32)
            ys.append(jnp.maximum(y + b2, 0.0))
        out = ys[0] if n_splits == 1 else jnp.concatenate(ys, axis=-1)
        o_ref[...] = out.astype(o_ref.dtype)   # single full-lane-width store

    return kernel


def edge_nn_prepare(w1, b1, w2, b2, *, compute_dtype=jnp.bfloat16):
    """Expand weights once per parameter set (hoisted out of the hot path).

    w1: (c_in, c_hidden); b1: (c_hidden,)|(1,c_hidden); w2: (c_hidden, c_out);
    b2: (c_out,)|(1,c_out).  Weights are pre-transposed vs. nn.Linear.
    Use compute_dtype=jnp.float32 for bit-parity validation."""
    c_in, c_hidden = w1.shape
    c_out = w2.shape[1]
    # Pack factor: P rows per slab row so the output slab width P*c_out is a
    # multiple of 128 lanes.  Keep P minimal (=16 for c_out=8).
    P = math.lcm(c_out, 128) // c_out
    n_splits = 2 if (P % 2 == 0 and P >= 2) else 1
    Pk = P // n_splits
    eye = jnp.eye(Pk, dtype=jnp.float32)
    w1_bd = jnp.kron(eye, w1.astype(jnp.float32)).astype(compute_dtype)
    w2_bd = jnp.kron(eye, w2.astype(jnp.float32)).astype(compute_dtype)
    b1_t = jnp.tile(jnp.reshape(b1, (1, c_hidden)).astype(jnp.float32), (1, Pk))
    b2_t = jnp.tile(jnp.reshape(b2, (1, c_out)).astype(jnp.float32), (1, Pk))
    return dict(P=P, n_splits=n_splits, c_in=c_in, c_hidden=c_hidden,
                c_out=c_out, w1=w1_bd, b1=b1_t, w2=w2_bd, b2=b2_t)


def edge_nn_forward(x, params, *, tm_slab=2048, min_grid_steps=1,
                    out_dtype=None):
    """x: (N, c_in) -> (N, c_out).  params from edge_nn_prepare()."""
    N, c_in = x.shape
    assert c_in == params["c_in"]
    P = params["P"]
    c_out = params["c_out"]
    out_dtype = x.dtype if out_dtype is None else out_dtype

    # Pad only up to a multiple of P (<= P-1 rows; zero-cost if already
    # aligned) so the slab reshape is a free row-major view.
    N_pad = _round_up(N, P)
    if N_pad != N:
        x = jnp.pad(x, ((0, N_pad - N), (0, 0)))
    R = N_pad // P
    x_slab = x.reshape(R, P * c_in)            # free reshape, NO dtype cast

    # Tile size in slab rows: big (>=512 recommended) to amortize the ~0.35 us
    # per-step overhead, capped at 4096 for v7x VMEM safety, never larger than
    # the data, sublane (8) aligned.
    tm_slab = max(8, min(_round_up(int(tm_slab), 8), 4096))
    tm_slab = min(tm_slab, _round_up(R, 8))
    if min_grid_steps > 1:                     # only useful on v7x (2 TCs)
        cap = _round_up(pl.cdiv(R, min_grid_steps), 8)
        tm_slab = min(tm_slab, max(cap, 512))
    grid = pl.cdiv(R, tm_slab)                 # partial last block is masked

    w1, b1, w2, b2 = params["w1"], params["b1"], params["w2"], params["b2"]
    k_in, k_hidden = w1.shape
    k_out = w2.shape[1]

    out_slab = pl.pallas_call(
        _make_kernel(params["n_splits"]),
        out_shape=jax.ShapeDtypeStruct((R, P * c_out), out_dtype),
        grid_spec=pltpu.PrefetchScalarGridSpec(
            num_scalar_prefetch=0,
            grid=(grid,),
            in_specs=[
                pl.BlockSpec((tm_slab, P * c_in), lambda i: (i, 0)),  # x slab
                pl.BlockSpec((k_in, k_hidden), lambda i: (0, 0)),     # W1 half
                pl.BlockSpec((1, k_hidden), lambda i: (0, 0)),        # b1
                pl.BlockSpec((k_hidden, k_out), lambda i: (0, 0)),    # W2 half
                pl.BlockSpec((1, k_out), lambda i: (0, 0)),           # b2
            ],
            out_specs=pl.BlockSpec((tm_slab, P * c_out), lambda i: (i, 0)),
        ),
        compiler_params=pltpu.CompilerParams(
            dimension_semantics=("parallel",),
            # Raise v5e's 16 MiB default; stays well under v7x's 64 MiB VMEM.
            vmem_limit_bytes=48 * 1024 * 1024,
        ),
    )(x_slab, w1, b1, w2, b2)

    out = out_slab.reshape(N_pad, c_out)
    return out if N_pad == N else out[:N]


def edge_nn_reference(x, w1, b1, w2, b2):
    h = jnp.maximum(x @ w1 + b1, 0.0)
    return jnp.maximum(h @ w2 + b2, 0.0)


if __name__ == "__main__":
    # Small shapes consistent with edge_NN(c_in, c_hidden, c_out); N is not a
    # multiple of the pack factor to exercise the (tiny) padding path and the
    # partial-last-block masking.
    N, c_in, c_hidden, c_out = 1000, 16, 32, 8

    key = jax.random.PRNGKey(0)
    kx, kw1, kb1, kw2, kb2 = jax.random.split(key, 5)

    x = jax.random.normal(kx, (N, c_in), dtype=jnp.float32)

    # Deterministic init mimicking nn.Linear's uniform(-1/sqrt(fan_in), ...).
    lim1 = 1.0 / math.sqrt(c_in)
    lim2 = 1.0 / math.sqrt(c_hidden)
    w1 = jax.random.uniform(kw1, (c_in, c_hidden), jnp.float32, -lim1, lim1)
    b1 = jax.random.uniform(kb1, (c_hidden,), jnp.float32, -lim1, lim1)
    w2 = jax.random.uniform(kw2, (c_hidden, c_out), jnp.float32, -lim2, lim2)
    b2 = jax.random.uniform(kb2, (c_out,), jnp.float32, -lim2, lim2)

    params = edge_nn_prepare(w1, b1, w2, b2)           # hoisted, once per net
    out = jax.block_until_ready(edge_nn_forward(x, params))

    ref = edge_nn_reference(x, w1, b1, w2, b2)
    assert out.shape == (N, c_out)
    # bf16 compute dtype / f32 accumulation -> modest tolerance vs f32 ref.
    assert jnp.allclose(out, ref, atol=5e-2, rtol=5e-2), "mismatch vs reference"

    print("KERNEL_OK")
</pallas_src>

<mosaic_0001>
module attributes {stable_mosaic.version = 11 : i64} {
  func.func @kernel(%arg0: i32, %arg1: memref<64x256xf32, #tpu.memory_space<vmem>>, %arg2: memref<128x256xbf16, #tpu.memory_space<vmem>>, %arg3: memref<1x256xf32, #tpu.memory_space<vmem>>, %arg4: memref<256x64xbf16, #tpu.memory_space<vmem>>, %arg5: memref<1x64xf32, #tpu.memory_space<vmem>>, %arg6: memref<64x128xf32, #tpu.memory_space<vmem>>) attributes {dimension_semantics = [#tpu.dimension_semantics<parallel>], iteration_bounds = array<i64: 1>, scalar_prefetch = 0 : i64, scratch_operands = 0 : i64, tpu.core_type = #tpu.core_type<tc>, window_params = [{transform_indices = @transform_0, window_bounds = array<i64: 64, 256>}, {pipeline_mode = #tpu.pipeline_mode<synchronous>, transform_indices = @transform_1, window_bounds = array<i64: 128, 256>}, {pipeline_mode = #tpu.pipeline_mode<synchronous>, transform_indices = @transform_2, window_bounds = array<i64: 1, 256>}, {pipeline_mode = #tpu.pipeline_mode<synchronous>, transform_indices = @transform_3, window_bounds = array<i64: 256, 64>}, {pipeline_mode = #tpu.pipeline_mode<synchronous>, transform_indices = @transform_4, window_bounds = array<i64: 1, 64>}, {transform_indices = @transform_5, window_bounds = array<i64: 64, 128>}]} {
    %c0 = arith.constant 0 : index
    %c0_0 = arith.constant 0 : index
    %0 = vector.load %arg2[%c0, %c0_0] : memref<128x256xbf16, #tpu.memory_space<vmem>>, vector<128x256xbf16>
    %c0_1 = arith.constant 0 : index
    %c0_2 = arith.constant 0 : index
    %1 = vector.load %arg3[%c0_1, %c0_2] : memref<1x256xf32, #tpu.memory_space<vmem>>, vector<1x256xf32>
    %c0_3 = arith.constant 0 : index
    %c0_4 = arith.constant 0 : index
    %2 = vector.load %arg4[%c0_3, %c0_4] : memref<256x64xbf16, #tpu.memory_space<vmem>>, vector<256x64xbf16>
    %c0_5 = arith.constant 0 : index
    %c0_6 = arith.constant 0 : index
    %3 = vector.load %arg5[%c0_5, %c0_6] : memref<1x64xf32, #tpu.memory_space<vmem>>, vector<1x64xf32>
    %c0_7 = arith.constant 0 : index
    %c0_8 = arith.constant 0 : index
    %4 = vector.load %arg1[%c0_7, %c0_8] : memref<64x256xf32, #tpu.memory_space<vmem>>, vector<64x256xf32>
    %5 = arith.truncf %4 : vector<64x256xf32> to vector<64x256xbf16>
    %6 = vector.extract_strided_slice %5 {offsets = [0, 0], sizes = [64, 128], strides = [1, 1]} : vector<64x256xbf16> to vector<64x128xbf16>
    %cst = arith.constant dense<0.000000e+00> : vector<64x256xf32>
    %7 = tpu.matmul %6, %0, %cst {dimension_numbers = #tpu.dot_dimension_numbers<[1], [0], [0], [1], [0, 0, 1, 1], [], []>} : vector<64x128xbf16>, vector<128x256xbf16>, vector<64x256xf32> -> vector<64x256xf32>
    %8 = vector.broadcast %1 : vector<1x256xf32> to vector<64x256xf32>
    %9 = arith.addf %7, %8 : vector<64x256xf32>
    %cst_9 = arith.constant 0.000000e+00 : f32
    %10 = vector.broadcast %cst_9 : f32 to vector<64x256xf32>
    %11 = arith.maximumf %9, %10 : vector<64x256xf32>
    %12 = arith.truncf %11 : vector<64x256xf32> to vector<64x256xbf16>
    %cst_10 = arith.constant dense<0.000000e+00> : vector<64x64xf32>
    %13 = tpu.matmul %12, %2, %cst_10 {dimension_numbers = #tpu.dot_dimension_numbers<[1], [0], [0], [1], [0, 0, 1, 1], [], []>} : vector<64x256xbf16>, vector<256x64xbf16>, vector<64x64xf32> -> vector<64x64xf32>
    %14 = vector.broadcast %3 : vector<1x64xf32> to vector<64x64xf32>
    %15 = arith.addf %13, %14 : vector<64x64xf32>
    %cst_11 = arith.constant 0.000000e+00 : f32
    %16 = vector.broadcast %cst_11 : f32 to vector<64x64xf32>
    %17 = arith.maximumf %15, %16 : vector<64x64xf32>
    %18 = vector.extract_strided_slice %5 {offsets = [0, 128], sizes = [64, 128], strides = [1, 1]} : vector<64x256xbf16> to vector<64x128xbf16>
    %cst_12 = arith.constant dense<0.000000e+00> : vector<64x256xf32>
    %19 = tpu.matmul %18, %0, %cst_12 {dimension_numbers = #tpu.dot_dimension_numbers<[1], [0], [0], [1], [0, 0, 1, 1], [], []>} : vector<64x128xbf16>, vector<128x256xbf16>, vector<64x256xf32> -> vector<64x256xf32>
    %20 = vector.broadcast %1 : vector<1x256xf32> to vector<64x256xf32>
    %21 = arith.addf %19, %20 : vector<64x256xf32>
    %cst_13 = arith.constant 0.000000e+00 : f32
    %22 = vector.broadcast %cst_13 : f32 to vector<64x256xf32>
    %23 = arith.maximumf %21, %22 : vector<64x256xf32>
    %24 = arith.truncf %23 : vector<64x256xf32> to vector<64x256xbf16>
    %cst_14 = arith.constant dense<0.000000e+00> : vector<64x64xf32>
    %25 = tpu.matmul %24, %2, %cst_14 {dimension_numbers = #tpu.dot_dimension_numbers<[1], [0], [0], [1], [0, 0, 1, 1], [], []>} : vector<64x256xbf16>, vector<256x64xbf16>, vector<64x64xf32> -> vector<64x64xf32>
    %26 = vector.broadcast %3 : vector<1x64xf32> to vector<64x64xf32>
    %27 = arith.addf %25, %26 : vector<64x64xf32>
    %cst_15 = arith.constant 0.000000e+00 : f32
    %28 = vector.broadcast %cst_15 : f32 to vector<64x64xf32>
    %29 = arith.maximumf %27, %28 : vector<64x64xf32>
    %30 = tpu.concatenate %17, %29 in 1 : vector<64x64xf32>, vector<64x64xf32> -> vector<64x128xf32>
    %c0_16 = arith.constant 0 : index
    %c0_17 = arith.constant 0 : index
    %31 = vector.load %arg6[%c0_16, %c0_17] : memref<64x128xf32, #tpu.memory_space<vmem>>, vector<64x128xf32>
    tpu.vector_store %arg6[%c0_16, %c0_17], %30 {strides = array<i32>} : memref<64x128xf32, #tpu.memory_space<vmem>>, vector<64x128xf32>,
    return
  }
  func.func @transform_0(%arg0: i32) -> (i32, i32) {
    %c0_i32 = arith.constant 0 : i32
    %c0_i32_0 = arith.constant 0 : i32
    return %arg0, %c0_i32 : i32, i32
  }
  func.func @transform_1(%arg0: i32) -> (i32, i32) {
    %c0_i32 = arith.constant 0 : i32
    %c0_i32_0 = arith.constant 0 : i32
    %c0_i32_1 = arith.constant 0 : i32
    return %c0_i32, %c0_i32_0 : i32, i32
  }
  func.func @transform_2(%arg0: i32) -> (i32, i32) {
    %c0_i32 = arith.constant 0 : i32
    %c0_i32_0 = arith.constant 0 : i32
    %c0_i32_1 = arith.constant 0 : i32
    return %c0_i32, %c0_i32_0 : i32, i32
  }
  func.func @transform_3(%arg0: i32) -> (i32, i32) {
    %c0_i32 = arith.constant 0 : i32
    %c0_i32_0 = arith.constant 0 : i32
    %c0_i32_1 = arith.constant 0 : i32
    return %c0_i32, %c0_i32_0 : i32, i32
  }
  func.func @transform_4(%arg0: i32) -> (i32, i32) {
    %c0_i32 = arith.constant 0 : i32
    %c0_i32_0 = arith.constant 0 : i32
    %c0_i32_1 = arith.constant 0 : i32
    return %c0_i32, %c0_i32_0 : i32, i32
  }
  func.func @transform_5(%arg0: i32) -> (i32, i32) {
    %c0_i32 = arith.constant 0 : i32
    %c0_i32_0 = arith.constant 0 : i32
    return %arg0, %c0_i32 : i32, i32
  }
}

</mosaic_0001>

<llo_original>
// kernel: tpu_custom_call.1
$region0: #{tpu_custom_call.1}
  #allocation0 [shape = 'u32[]', space=smem, size = 0x4, offset = 0x4, fixed_abs, tag = 'smem constant byte address 0x4 - core index']
  #allocation1 [shape = 'u32[144,128]{1,0:T(1,128)}', space=vmem, size = 0x12000, scoped, tag = 'internal scratch']
  %s0 = inlined_call_operand.vmem [shape: f32[63,256], index: 0, kind: input, shape index: {}]
  %s1 = inlined_call_operand.hbm [shape: bf16[128,256], index: 1, kind: input, shape index: {}]
  %s2 = inlined_call_operand.vmem [shape: f32[1,256], index: 2, kind: input, shape index: {}]
  %s3 = inlined_call_operand.vmem [shape: bf16[256,64], index: 3, kind: input, shape index: {}]
  %s4 = inlined_call_operand.vmem [shape: f32[1,64], index: 4, kind: input, shape index: {}]
  %s5 = inlined_call_operand.hbm [shape: f32[63,128], index: 5, kind: output, shape index: {}]
  %s6 = sld [smem:[#allocation0]]
  $region34: #{tpu_custom_call.1} parent=0
    _
  %s8 = ssub.s32 1, %s6
  %s9 = scalar_select 0, %s8, %s6
  $region1: #{tpu_custom_call.1} parent=0
    #allocation2 [shape = 'u8[65536]{0}', space=vmem, size = 0x10000, scoped, tag = 'input window, operand 1, single buffered']
    #allocation3 [shape = 's32[1]{0}', space=sflag, size = 0x4, scoped, tag = 'scoped memory for tpu_custom_call.1']
    #allocation4 [shape = 's32[1]{0}', space=sflag, size = 0x4, scoped, tag = 'scoped memory for tpu_custom_call.1']
    #allocation5 [shape = 'u8[32768]{0}', space=vmem, size = 0x8000, scoped, tag = 'output window, operand 0, single buffered']
    %10 = vsyncpa [#allocation3], 0
    %11 = vsyncpa [#allocation4], 0
    // Predicated region
    $region2: #{tpu_custom_call.1} parent=1 // pred_check
      _
    $region3: #{tpu_custom_call.1} parent=1 // pred_check_branch
      %13 = sbr.rel (0) target = $region5
    $region4: #{tpu_custom_call.1} parent=1 // pred_region
      _
    $region5: #{tpu_custom_call.1} parent=1 // pred_fallthru
      _
    // Predicated region
    $region6: #{tpu_custom_call.1} parent=1 // pred_check
      _
    $region7: #{tpu_custom_call.1} parent=1 // pred_check_branch
      %15 = sbr.rel (0) target = $region9
    $region8: #{tpu_custom_call.1} parent=1 // pred_region
      %s17 = ssub.s32 2048, 2048
      %18 = vsyncadd [#allocation3], %s17
      %s19 = sshll.u32 [#allocation2], 4
      %s20 = int_to_ptr.vmem [resolvable:$true] %s19
      %25 = dma.hbm_to_vmem [thread:$0]  %s1, 2048, %s20, [#allocation3], 128, 128, 8
    $region9: #{tpu_custom_call.1} parent=1 // pred_fallthru
      _
    // Predicated region
    $region10: #{tpu_custom_call.1} parent=1 // pred_check
      _
    $region11: #{tpu_custom_call.1} parent=1 // pred_check_branch
      %27 = sbr.rel (0) target = $region13
    $region12: #{tpu_custom_call.1} parent=1 // pred_region
      _
    $region13: #{tpu_custom_call.1} parent=1 // pred_fallthru
      _
    // Predicated region
    $region14: #{tpu_custom_call.1} parent=1 // pred_check
      _
    $region15: #{tpu_custom_call.1} parent=1 // pred_check_branch
      %29 = sbr.rel (0) target = $region17
    $region16: #{tpu_custom_call.1} parent=1 // pred_region
      _
    $region17: #{tpu_custom_call.1} parent=1 // pred_fallthru
      _
    // Predicated region
    $region18: #{tpu_custom_call.1} parent=1 // pred_check
      _
    $region19: #{tpu_custom_call.1} parent=1 // pred_check_branch
      %31 = sbr.rel (0) target = $region21
    $region20: #{tpu_custom_call.1} parent=1 // pred_region
      _
    $region21: #{tpu_custom_call.1} parent=1 // pred_fallthru
      _
    // Predicated region
    $region22: #{tpu_custom_call.1} parent=1 // pred_check
      _
    $region23: #{tpu_custom_call.1} parent=1 // pred_check_branch
      %33 = sbr.rel (0) target = $region25
    $region24: #{tpu_custom_call.1} parent=1 // pred_region
      %34 = dma.done [#allocation3], 2048
    $region25: #{tpu_custom_call.1} parent=1 // pred_fallthru
      _
    %v36 = vld [vmem:[#allocation2] sm:$0xff]
    %v37 = vld [vmem:[#allocation2 + $0x8] sm:$0xff]
    %v38 = vld [vmem:[#allocation2 + $0x10] sm:$0xff]
    %v39 = vld [vmem:[#allocation2 + $0x18] sm:$0xff]
    %v40 = vld [vmem:[#allocation2 + $0x20] sm:$0xff]
    %v41 = vld [vmem:[#allocation2 + $0x28] sm:$0xff]
    %v42 = vld [vmem:[#allocation2 + $0x30] sm:$0xff]
    %v43 = vld [vmem:[#allocation2 + $0x38] sm:$0xff]
    %v44 = vld [vmem:[#allocation2 + $0x40] sm:$0xff]
    %v45 = vld [vmem:[#allocation2 + $0x48] sm:$0xff]
    %v46 = vld [vmem:[#allocation2 + $0x50] sm:$0xff]
    %v47 = vld [vmem:[#allocation2 + $0x58] sm:$0xff]
    %v48 = vld [vmem:[#allocation2 + $0x60] sm:$0xff]
    %v49 = vld [vmem:[#allocation2 + $0x68] sm:$0xff]
    %v50 = vld [vmem:[#allocation2 + $0x70] sm:$0xff]
    %v51 = vld [vmem:[#allocation2 + $0x78] sm:$0xff]
    %v52 = vld [vmem:[%s2] sm:$0x3]
    %v53 = vld [vmem:[%s3] sm:$0xf]
    %v54 = vld [vmem:[%s3 + $0x4] sm:$0xf]
    %v55 = vld [vmem:[%s3 + $0x8] sm:$0xf]
    %v56 = vld [vmem:[%s3 + $0xc] sm:$0xf]
    %v57 = vld [vmem:[%s3 + $0x10] sm:$0xf]
    %v58 = vld [vmem:[%s3 + $0x14] sm:$0xf]
    %v59 = vld [vmem:[%s3 + $0x18] sm:$0xf]
    %v60 = vld [vmem:[%s3 + $0x1c] sm:$0xf]
    %v61 = vld [vmem:[%s3 + $0x20] sm:$0xf]
    %v62 = vld [vmem:[%s3 + $0x24] sm:$0xf]
    %v63 = vld [vmem:[%s3 + $0x28] sm:$0xf]
    %v64 = vld [vmem:[%s3 + $0x2c] sm:$0xf]
    %v65 = vld [vmem:[%s3 + $0x30] sm:$0xf]
    %v66 = vld [vmem:[%s3 + $0x34] sm:$0xf]
    %v67 = vld [vmem:[%s3 + $0x38] sm:$0xf]
    %v68 = vld [vmem:[%s3 + $0x3c] sm:$0xf]
    %v69 = vld [vmem:[%s3 + $0x40] sm:$0xf]
    %v70 = vld [vmem:[%s3 + $0x44] sm:$0xf]
    %v71 = vld [vmem:[%s3 + $0x48] sm:$0xf]
    %v72 = vld [vmem:[%s3 + $0x4c] sm:$0xf]
    %v73 = vld [vmem:[%s3 + $0x50] sm:$0xf]
    %v74 = vld [vmem:[%s3 + $0x54] sm:$0xf]
    %v75 = vld [vmem:[%s3 + $0x58] sm:$0xf]
    %v76 = vld [vmem:[%s3 + $0x5c] sm:$0xf]
    %v77 = vld [vmem:[%s3 + $0x60] sm:$0xf]
    %v78 = vld [vmem:[%s3 + $0x64] sm:$0xf]
    %v79 = vld [vmem:[%s3 + $0x68] sm:$0xf]
    %v80 = vld [vmem:[%s3 + $0x6c] sm:$0xf]
    %v81 = vld [vmem:[%s3 + $0x70] sm:$0xf]
    %v82 = vld [vmem:[%s3 + $0x74] sm:$0xf]
    %v83 = vld [vmem:[%s3 + $0x78] sm:$0xf]
    %v84 = vld [vmem:[%s3 + $0x7c] sm:$0xf]
    %v85 = vld [vmem:[%s4] sm:$0x1]
    %v86 = vld [vmem:[%s0] sm:$0xff]
    %v87 = vld [vmem:[%s0 + $0x8] sm:$0xff]
    %v88 = vld [vmem:[%s0 + $0x10] sm:$0xff]
    %v89 = vld [vmem:[%s0 + $0x18] sm:$0xff]
    %v90 = vld [vmem:[%s0 + $0x20] sm:$0xff]
    %v91 = vld [vmem:[%s0 + $0x28] sm:$0xff]
    %v92 = vld [vmem:[%s0 + $0x30] sm:$0xff]
    %v93 = vld [vmem:[%s0 + $0x38] sm:$0xff]
    %v94 = vld [vmem:[%s0 + $0x40] sm:$0xff]
    %v95 = vld [vmem:[%s0 + $0x48] sm:$0xff]
    %v96 = vld [vmem:[%s0 + $0x50] sm:$0xff]
    %v97 = vld [vmem:[%s0 + $0x58] sm:$0xff]
    %v98 = vld [vmem:[%s0 + $0x60] sm:$0xff]
    %v99 = vld [vmem:[%s0 + $0x68] sm:$0xff]
    %v100 = vld [vmem:[%s0 + $0x70] sm:$0xff]
    %v101 = vld [vmem:[%s0 + $0x78] sm:$0xff]
    %v102 = vpack.c.bf16 %v88, %v86
    %v103 = vpack.c.bf16 %v89, %v87
    %v104 = vpack.c.bf16 %v92, %v90
    %v105 = vpack.c.bf16 %v93, %v91
    %v106 = vpack.c.bf16 %v96, %v94
    %v107 = vpack.c.bf16 %v97, %v95
    %v108 = vpack.c.bf16 %v100, %v98
    %v109 = vpack.c.bf16 %v101, %v99
    %v111 = vlaneseq
    %v112 = vshrl.u32 %v111, 7
    %v113 = vsub.s32 0, %v112
    %v114 = vrot.slane %v52, %v113
    %v115 = vlaneseq
    %v116 = vshrl.u32 %v115, 7
    %v117 = vsub.s32 1, %v116
    %v118 = vrot.slane %v52, %v117
    %v137 = vunpack.c.l.b16 %v36
    %v138 = vunpack.c.h.b16 %v36
    %v139 = vunpack.c.l.b16 %v37
    %v140 = vunpack.c.h.b16 %v37
    %v141 = vunpack.c.l.b16 %v38
    %v142 = vunpack.c.h.b16 %v38
    %v143 = vunpack.c.l.b16 %v39
    %v144 = vunpack.c.h.b16 %v39
    %v145 = vunpack.c.l.b16 %v40
    %v146 = vunpack.c.h.b16 %v40
    %v147 = vunpack.c.l.b16 %v41
    %v148 = vunpack.c.h.b16 %v41
    %v149 = vunpack.c.l.b16 %v42
    %v150 = vunpack.c.h.b16 %v42
    %v151 = vunpack.c.l.b16 %v43
    %v152 = vunpack.c.h.b16 %v43
    %v153 = vunpack.c.l.b16 %v44
    %v154 = vunpack.c.h.b16 %v44
    %v155 = vunpack.c.l.b16 %v45
    %v156 = vunpack.c.h.b16 %v45
    %v157 = vunpack.c.l.b16 %v46
    %v158 = vunpack.c.h.b16 %v46
    %v159 = vunpack.c.l.b16 %v47
    %v160 = vunpack.c.h.b16 %v47
    %v161 = vunpack.c.l.b16 %v48
    %v162 = vunpack.c.h.b16 %v48
    %v163 = vunpack.c.l.b16 %v49
    %v164 = vunpack.c.h.b16 %v49
    %v165 = vunpack.c.l.b16 %v50
    %v166 = vunpack.c.h.b16 %v50
    %v167 = vunpack.c.l.b16 %v51
    %v168 = vunpack.c.h.b16 %v51
    %v169 = vpack.c.b16 %v139, %v137
    %v170 = vpack.c.b16 %v140, %v138
    %v171 = vpack.c.b16 %v143, %v141
    %v172 = vpack.c.b16 %v144, %v142
    %v173 = vpack.c.b16 %v147, %v145
    %v174 = vpack.c.b16 %v148, %v146
    %v175 = vpack.c.b16 %v151, %v149
    %v176 = vpack.c.b16 %v152, %v150
    %v177 = vpack.c.b16 %v155, %v153
    %v178 = vpack.c.b16 %v156, %v154
    %v179 = vpack.c.b16 %v159, %v157
    %v180 = vpack.c.b16 %v160, %v158
    %v181 = vpack.c.b16 %v163, %v161
    %v182 = vpack.c.b16 %v164, %v162
    %v183 = vpack.c.b16 %v167, %v165
    %v184 = vpack.c.b16 %v168, %v166
    %201 = vmatprep.subr.bf16.mxu0 %v184
    %202 = vmatpush1.bf16.msra.mxu0 %v183
    %203 = vmatprep.subr.bf16.mxu0 %v182
    %204 = vmatpush1.bf16.msra.mxu0 %v181
    %205 = vmatprep.subr.bf16.mxu0 %v180
    %206 = vmatpush1.bf16.msra.mxu0 %v179
    %207 = vmatprep.subr.bf16.mxu0 %v178
    %208 = vmatpush1.bf16.msra.mxu0 %v177
    %209 = vmatprep.subr.bf16.mxu0 %v176
    %210 = vmatpush1.bf16.msra.mxu0 %v175
    %211 = vmatprep.subr.bf16.mxu0 %v174
    %212 = vmatpush1.bf16.msra.mxu0 %v173
    %213 = vmatprep.subr.bf16.mxu0 %v172
    %214 = vmatpush1.bf16.msra.mxu0 %v171
    %215 = vmatprep.subr.bf16.mxu0 %v170
    %216 = vmatpush1.bf16.msra.mxu0 %v169
    %217 = vmatprep.subr.bf16.mxu0 0
    %218 = vmatpush2.bf16.msra.mxu0 0
    %219 = vmatprep.subr.bf16.mxu0 0
    %220 = vmatpush2.bf16.msra.mxu0 0
    %221 = vmatprep.subr.bf16.mxu0 0
    %222 = vmatpush2.bf16.msra.mxu0 0
    %223 = vmatprep.subr.bf16.mxu0 0
    %224 = vmatpush2.bf16.msra.mxu0 0
    %225 = vmatprep.subr.bf16.mxu0 0
    %226 = vmatpush2.bf16.msra.mxu0 0
    %227 = vmatprep.subr.bf16.mxu0 0
    %228 = vmatpush2.bf16.msra.mxu0 0
    %229 = vmatprep.subr.bf16.mxu0 0
    %230 = vmatpush2.bf16.msra.mxu0 0
    %231 = vmatprep.subr.bf16.mxu0 0
    %232 = vmatpush2.bf16.msra.mxu0 0
    %233 = vmatprep.mubr.bf16.mxu0 0
    %234 = vmatmul.mubr.bf16.gmra.mxu0 %v102
    %v235 = vpop.f32.mrf.mxu0
    %v236 = vadd.f32 %v114, %v235
    %v237 = vpop.f32.mrf.mxu0
    %v238 = vadd.f32 %v118, %v237
    %v239 = vpop.f32.mrf.mxu0
    %v240 = vadd.f32 %v114, %v239
    %v241 = vpop.f32.mrf.mxu0
    %v242 = vadd.f32 %v118, %v241
    %243 = vmatprep.mubr.bf16.mxu0 0
    %244 = vmatmul.mubr.bf16.gmra.mxu0 %v104
    %v245 = vpop.f32.mrf.mxu0
    %v246 = vadd.f32 %v114, %v245
    %v247 = vpop.f32.mrf.mxu0
    %v248 = vadd.f32 %v118, %v247
    %v249 = vpop.f32.mrf.mxu0
    %v250 = vadd.f32 %v114, %v249
    %v251 = vpop.f32.mrf.mxu0
    %v252 = vadd.f32 %v118, %v251
    %253 = vmatprep.mubr.bf16.mxu0 0
    %254 = vmatmul.mubr.bf16.gmra.mxu0 %v106
    %v255 = vpop.f32.mrf.mxu0
    %v256 = vadd.f32 %v114, %v255
    %v257 = vpop.f32.mrf.mxu0
    %v258 = vadd.f32 %v118, %v257
    %v259 = vpop.f32.mrf.mxu0
    %v260 = vadd.f32 %v114, %v259
    %v261 = vpop.f32.mrf.mxu0
    %v262 = vadd.f32 %v118, %v261
    %263 = vmatprep.mubr.bf16.mxu0 0
    %264 = vmatmul.mubr.bf16.gmra.mxu0 %v108
    %v265 = vpop.f32.mrf.mxu0
    %v266 = vadd.f32 %v114, %v265
    %v267 = vpop.f32.mrf.mxu0
    %v268 = vadd.f32 %v118, %v267
    %v269 = vpop.f32.mrf.mxu0
    %v270 = vadd.f32 %v114, %v269
    %v271 = vpop.f32.mrf.mxu0
    %v272 = vadd.f32 %v118, %v271
    %273 = vdwg.mxu0
    %v274 = vmax.f32 %v236, 0.0
    %v275 = vmax.f32 %v238, 0.0
    %v276 = vmax.f32 %v240, 0.0
    %v277 = vmax.f32 %v242, 0.0
    %v278 = vmax.f32 %v246, 0.0
    %v279 = vmax.f32 %v248, 0.0
    %v280 = vmax.f32 %v250, 0.0
    %v281 = vmax.f32 %v252, 0.0
    %v282 = vmax.f32 %v256, 0.0
    %v283 = vmax.f32 %v258, 0.0
    %v284 = vmax.f32 %v260, 0.0
    %v285 = vmax.f32 %v262, 0.0
    %v286 = vmax.f32 %v266, 0.0
    %v287 = vmax.f32 %v268, 0.0
    %v288 = vmax.f32 %v270, 0.0
    %v289 = vmax.f32 %v272, 0.0
    %v290 = vpack.c.bf16 %v276, %v274
    %v291 = vpack.c.bf16 %v277, %v275
    %v292 = vpack.c.bf16 %v280, %v278
    %v293 = vpack.c.bf16 %v281, %v279
    %v294 = vpack.c.bf16 %v284, %v282
    %v295 = vpack.c.bf16 %v285, %v283
    %v296 = vpack.c.bf16 %v288, %v286
    %v297 = vpack.c.bf16 %v289, %v287
    %v299 = vlaneseq
    %v300 = vshrl.u32 %v299, 7
    %v301 = vsub.s32 0, %v300
    %v302 = vrot.slane %v85, %v301
    %v336 = vunpack.c.l.b16 %v53
    %v337 = vunpack.c.l.b16 %v54
    %v338 = vunpack.c.l.b16 %v55
    %v339 = vunpack.c.l.b16 %v56
    %v340 = vunpack.c.l.b16 %v57
    %v341 = vunpack.c.l.b16 %v58
    %v342 = vunpack.c.l.b16 %v59
    %v343 = vunpack.c.l.b16 %v60
    %v344 = vunpack.c.l.b16 %v61
    %v345 = vunpack.c.l.b16 %v62
    %v346 = vunpack.c.l.b16 %v63
    %v347 = vunpack.c.l.b16 %v64
    %v348 = vunpack.c.l.b16 %v65
    %v349 = vunpack.c.l.b16 %v66
    %v350 = vunpack.c.l.b16 %v67
    %v351 = vunpack.c.l.b16 %v68
    %v352 = vunpack.c.l.b16 %v69
    %v353 = vunpack.c.l.b16 %v70
    %v354 = vunpack.c.l.b16 %v71
    %v355 = vunpack.c.l.b16 %v72
    %v356 = vunpack.c.l.b16 %v73
    %v357 = vunpack.c.l.b16 %v74
    %v358 = vunpack.c.l.b16 %v75
    %v359 = vunpack.c.l.b16 %v76
    %v360 = vunpack.c.l.b16 %v77
    %v361 = vunpack.c.l.b16 %v78
    %v362 = vunpack.c.l.b16 %v79
    %v363 = vunpack.c.l.b16 %v80
    %v364 = vunpack.c.l.b16 %v81
    %v365 = vunpack.c.l.b16 %v82
    %v366 = vunpack.c.l.b16 %v83
    %v367 = vunpack.c.l.b16 %v84
    %v368 = vpack.c.b16 %v337, %v336
    %v369 = vpack.c.b16 %v339, %v338
    %v370 = vpack.c.b16 %v341, %v340
    %v371 = vpack.c.b16 %v343, %v342
    %v372 = vpack.c.b16 %v345, %v344
    %v373 = vpack.c.b16 %v347, %v346
    %v374 = vpack.c.b16 %v349, %v348
    %v375 = vpack.c.b16 %v351, %v350
    %v376 = vpack.c.b16 %v353, %v352
    %v377 = vpack.c.b16 %v355, %v354
    %v378 = vpack.c.b16 %v357, %v356
    %v379 = vpack.c.b16 %v359, %v358
    %v380 = vpack.c.b16 %v361, %v360
    %v381 = vpack.c.b16 %v363, %v362
    %v382 = vpack.c.b16 %v365, %v364
    %v383 = vpack.c.b16 %v367, %v366
    %400 = vmatprep.subr.bf16.mxu0 0
    %401 = vmatpush1.bf16.msra.mxu0 %v375
    %402 = vmatprep.subr.bf16.mxu0 0
    %403 = vmatpush1.bf16.msra.mxu0 %v374
    %404 = vmatprep.subr.bf16.mxu0 0
    %405 = vmatpush1.bf16.msra.mxu0 %v373
    %406 = vmatprep.subr.bf16.mxu0 0
    %407 = vmatpush1.bf16.msra.mxu0 %v372
    %408 = vmatprep.subr.bf16.mxu0 0
    %409 = vmatpush1.bf16.msra.mxu0 %v371
    %410 = vmatprep.subr.bf16.mxu0 0
    %411 = vmatpush1.bf16.msra.mxu0 %v370
    %412 = vmatprep.subr.bf16.mxu0 0
    %413 = vmatpush1.bf16.msra.mxu0 %v369
    %414 = vmatprep.subr.bf16.mxu0 0
    %415 = vmatpush1.bf16.msra.mxu0 %v368
    %416 = vmatprep.subr.bf16.mxu0 0
    %417 = vmatpush2.bf16.msra.mxu0 %v383
    %418 = vmatprep.subr.bf16.mxu0 0
    %419 = vmatpush2.bf16.msra.mxu0 %v382
    %420 = vmatprep.subr.bf16.mxu0 0
    %421 = vmatpush2.bf16.msra.mxu0 %v381
    %422 = vmatprep.subr.bf16.mxu0 0
    %423 = vmatpush2.bf16.msra.mxu0 %v380
    %424 = vmatprep.subr.bf16.mxu0 0
    %425 = vmatpush2.bf16.msra.mxu0 %v379
    %426 = vmatprep.subr.bf16.mxu0 0
    %427 = vmatpush2.bf16.msra.mxu0 %v378
    %428 = vmatprep.subr.bf16.mxu0 0
    %429 = vmatpush2.bf16.msra.mxu0 %v377
    %430 = vmatprep.subr.bf16.mxu0 0
    %431 = vmatpush2.bf16.msra.mxu0 %v376
    %432 = vmatprep.mubr.bf16.mxu0 %v291
    %433 = vmatmul.mubr.bf16.gmra.mxu0 %v290
    %v434 = vpop.f32.mrf.mxu0
    %v435 = vadd.f32 %v302, %v434
    %v436 = vpop.f32.mrf.mxu0
    %v437 = vpop.f32.mrf.mxu0
    %v438 = vadd.f32 %v302, %v437
    %v439 = vpop.f32.mrf.mxu0
    %440 = vmatprep.mubr.bf16.mxu0 %v293
    %441 = vmatmul.mubr.bf16.gmra.mxu0 %v292
    %v442 = vpop.f32.mrf.mxu0
    %v443 = vadd.f32 %v302, %v442
    %v444 = vpop.f32.mrf.mxu0
    %v445 = vpop.f32.mrf.mxu0
    %v446 = vadd.f32 %v302, %v445
    %v447 = vpop.f32.mrf.mxu0
    %448 = vmatprep.mubr.bf16.mxu0 %v295
    %449 = vmatmul.mubr.bf16.gmra.mxu0 %v294
    %v450 = vpop.f32.mrf.mxu0
    %v451 = vadd.f32 %v302, %v450
    %v452 = vpop.f32.mrf.mxu0
    %v453 = vpop.f32.mrf.mxu0
    %v454 = vadd.f32 %v302, %v453
    %v455 = vpop.f32.mrf.mxu0
    %456 = vmatprep.mubr.bf16.mxu0 %v297
    %457 = vmatmul.mubr.bf16.gmra.mxu0 %v296
    %v458 = vpop.f32.mrf.mxu0
    %v459 = vadd.f32 %v302, %v458
    %v460 = vpop.f32.mrf.mxu0
    %v461 = vpop.f32.mrf.mxu0
    %v462 = vadd.f32 %v302, %v461
    %v463 = vpop.f32.mrf.mxu0
    %464 = vdwg.mxu0
    %v465 = vmax.f32 %v435, 0.0
    %v466 = vmax.f32 %v438, 0.0
    %v467 = vmax.f32 %v443, 0.0
    %v468 = vmax.f32 %v446, 0.0
    %v469 = vmax.f32 %v451, 0.0
    %v470 = vmax.f32 %v454, 0.0
    %v471 = vmax.f32 %v459, 0.0
    %v472 = vmax.f32 %v462, 0.0
    %473 = vmatprep.subr.bf16.mxu0 %v184
    %474 = vmatpush1.bf16.msra.mxu0 %v183
    %475 = vmatprep.subr.bf16.mxu0 %v182
    %476 = vmatpush1.bf16.msra.mxu0 %v181
    %477 = vmatprep.subr.bf16.mxu0 %v180
    %478 = vmatpush1.bf16.msra.mxu0 %v179
    %479 = vmatprep.subr.bf16.mxu0 %v178
    %480 = vmatpush1.bf16.msra.mxu0 %v177
    %481 = vmatprep.subr.bf16.mxu0 %v176
    %482 = vmatpush1.bf16.msra.mxu0 %v175
    %483 = vmatprep.subr.bf16.mxu0 %v174
    %484 = vmatpush1.bf16.msra.mxu0 %v173
    %485 = vmatprep.subr.bf16.mxu0 %v172
    %486 = vmatpush1.bf16.msra.mxu0 %v171
    %487 = vmatprep.subr.bf16.mxu0 %v170
    %488 = vmatpush1.bf16.msra.mxu0 %v169
    %489 = vmatprep.subr.bf16.mxu0 0
    %490 = vmatpush2.bf16.msra.mxu0 0
    %491 = vmatprep.subr.bf16.mxu0 0
    %492 = vmatpush2.bf16.msra.mxu0 0
    %493 = vmatprep.subr.bf16.mxu0 0
    %494 = vmatpush2.bf16.msra.mxu0 0
    %495 = vmatprep.subr.bf16.mxu0 0
    %496 = vmatpush2.bf16.msra.mxu0 0
    %497 = vmatprep.subr.bf16.mxu0 0
    %498 = vmatpush2.bf16.msra.mxu0 0
    %499 = vmatprep.subr.bf16.mxu0 0
    %500 = vmatpush2.bf16.msra.mxu0 0
    %501 = vmatprep.subr.bf16.mxu0 0
    %502 = vmatpush2.bf16.msra.mxu0 0
    %503 = vmatprep.subr.bf16.mxu0 0
    %504 = vmatpush2.bf16.msra.mxu0 0
    %505 = vmatprep.mubr.bf16.mxu0 0
    %506 = vmatmul.mubr.bf16.gmra.mxu0 %v103
    %v507 = vpop.f32.mrf.mxu0
    %v508 = vadd.f32 %v114, %v507
    %v509 = vpop.f32.mrf.mxu0
    %v510 = vadd.f32 %v118, %v509
    %v511 = vpop.f32.mrf.mxu0
    %v512 = vadd.f32 %v114, %v511
    %v513 = vpop.f32.mrf.mxu0
    %v514 = vadd.f32 %v118, %v513
    %515 = vmatprep.mubr.bf16.mxu0 0
    %516 = vmatmul.mubr.bf16.gmra.mxu0 %v105
    %v517 = vpop.f32.mrf.mxu0
    %v518 = vadd.f32 %v114, %v517
    %v519 = vpop.f32.mrf.mxu0
    %v520 = vadd.f32 %v118, %v519
    %v521 = vpop.f32.mrf.mxu0
    %v522 = vadd.f32 %v114, %v521
    %v523 = vpop.f32.mrf.mxu0
    %v524 = vadd.f32 %v118, %v523
    %525 = vmatprep.mubr.bf16.mxu0 0
    %526 = vmatmul.mubr.bf16.gmra.mxu0 %v107
    %v527 = vpop.f32.mrf.mxu0
    %v528 = vadd.f32 %v114, %v527
    %v529 = vpop.f32.mrf.mxu0
    %v530 = vadd.f32 %v118, %v529
    %v531 = vpop.f32.mrf.mxu0
    %v532 = vadd.f32 %v114, %v531
    %v533 = vpop.f32.mrf.mxu0
    %v534 = vadd.f32 %v118, %v533
    %535 = vmatprep.mubr.bf16.mxu0 0
    %536 = vmatmul.mubr.bf16.gmra.mxu0 %v109
    %v537 = vpop.f32.mrf.mxu0
    %v538 = vadd.f32 %v114, %v537
    %v539 = vpop.f32.mrf.mxu0
    %v540 = vadd.f32 %v118, %v539
    %v541 = vpop.f32.mrf.mxu0
    %v542 = vadd.f32 %v114, %v541
    %v543 = vpop.f32.mrf.mxu0
    %v544 = vadd.f32 %v118, %v543
    %545 = vdwg.mxu0
    %v546 = vmax.f32 %v508, 0.0
    %v547 = vmax.f32 %v510, 0.0
    %v548 = vmax.f32 %v512, 0.0
    %v549 = vmax.f32 %v514, 0.0
    %v550 = vmax.f32 %v518, 0.0
    %v551 = vmax.f32 %v520, 0.0
    %v552 = vmax.f32 %v522, 0.0
    %v553 = vmax.f32 %v524, 0.0
    %v554 = vmax.f32 %v528, 0.0
    %v555 = vmax.f32 %v530, 0.0
    %v556 = vmax.f32 %v532, 0.0
    %v557 = vmax.f32 %v534, 0.0
    %v558 = vmax.f32 %v538, 0.0
    %v559 = vmax.f32 %v540, 0.0
    %v560 = vmax.f32 %v542, 0.0
    %v561 = vmax.f32 %v544, 0.0
    %v562 = vpack.c.bf16 %v548, %v546
    %v563 = vpack.c.bf16 %v549, %v547
    %v564 = vpack.c.bf16 %v552, %v550
    %v565 = vpack.c.bf16 %v553, %v551
    %v566 = vpack.c.bf16 %v556, %v554
    %v567 = vpack.c.bf16 %v557, %v555
    %v568 = vpack.c.bf16 %v560, %v558
    %v569 = vpack.c.bf16 %v561, %v559
    %570 = vmatprep.subr.bf16.mxu0 0
    %571 = vmatpush1.bf16.msra.mxu0 %v375
    %572 = vmatprep.subr.bf16.mxu0 0
    %573 = vmatpush1.bf16.msra.mxu0 %v374
    %574 = vmatprep.subr.bf16.mxu0 0
    %575 = vmatpush1.bf16.msra.mxu0 %v373
    %576 = vmatprep.subr.bf16.mxu0 0
    %577 = vmatpush1.bf16.msra.mxu0 %v372
    %578 = vmatprep.subr.bf16.mxu0 0
    %579 = vmatpush1.bf16.msra.mxu0 %v371
    %580 = vmatprep.subr.bf16.mxu0 0
    %581 = vmatpush1.bf16.msra.mxu0 %v370
    %582 = vmatprep.subr.bf16.mxu0 0
    %583 = vmatpush1.bf16.msra.mxu0 %v369
    %584 = vmatprep.subr.bf16.mxu0 0
    %585 = vmatpush1.bf16.msra.mxu0 %v368
    %586 = vmatprep.subr.bf16.mxu0 0
    %587 = vmatpush2.bf16.msra.mxu0 %v383
    %588 = vmatprep.subr.bf16.mxu0 0
    %589 = vmatpush2.bf16.msra.mxu0 %v382
    %590 = vmatprep.subr.bf16.mxu0 0
    %591 = vmatpush2.bf16.msra.mxu0 %v381
    %592 = vmatprep.subr.bf16.mxu0 0
    %593 = vmatpush2.bf16.msra.mxu0 %v380
    %594 = vmatprep.subr.bf16.mxu0 0
    %595 = vmatpush2.bf16.msra.mxu0 %v379
    %596 = vmatprep.subr.bf16.mxu0 0
    %597 = vmatpush2.bf16.msra.mxu0 %v378
    %598 = vmatprep.subr.bf16.mxu0 0
    %599 = vmatpush2.bf16.msra.mxu0 %v377
    %600 = vmatprep.subr.bf16.mxu0 0
    %601 = vmatpush2.bf16.msra.mxu0 %v376
    %602 = vmatprep.mubr.bf16.mxu0 %v563
    %603 = vmatmul.mubr.bf16.gmra.mxu0 %v562
    %v604 = vpop.f32.mrf.mxu0
    %v605 = vadd.f32 %v302, %v604
    %v606 = vpop.f32.mrf.mxu0
    %v607 = vpop.f32.mrf.mxu0
    %v608 = vadd.f32 %v302, %v607
    %v609 = vpop.f32.mrf.mxu0
    %610 = vmatprep.mubr.bf16.mxu0 %v565
    %611 = vmatmul.mubr.bf16.gmra.mxu0 %v564
    %v612 = vpop.f32.mrf.mxu0
    %v613 = vadd.f32 %v302, %v612
    %v614 = vpop.f32.mrf.mxu0
    %v615 = vpop.f32.mrf.mxu0
    %v616 = vadd.f32 %v302, %v615
    %v617 = vpop.f32.mrf.mxu0
    %618 = vmatprep.mubr.bf16.mxu0 %v567
    %619 = vmatmul.mubr.bf16.gmra.mxu0 %v566
    %v620 = vpop.f32.mrf.mxu0
    %v621 = vadd.f32 %v302, %v620
    %v622 = vpop.f32.mrf.mxu0
    %v623 = vpop.f32.mrf.mxu0
    %v624 = vadd.f32 %v302, %v623
    %v625 = vpop.f32.mrf.mxu0
    %626 = vmatprep.mubr.bf16.mxu0 %v569
    %627 = vmatmul.mubr.bf16.gmra.mxu0 %v568
    %v628 = vpop.f32.mrf.mxu0
    %v629 = vadd.f32 %v302, %v628
    %v630 = vpop.f32.mrf.mxu0
    %v631 = vpop.f32.mrf.mxu0
    %v632 = vadd.f32 %v302, %v631
    %v633 = vpop.f32.mrf.mxu0
    %634 = vdwg.mxu0
    %v635 = vmax.f32 %v605, 0.0
    %v636 = vmax.f32 %v608, 0.0
    %v637 = vmax.f32 %v613, 0.0
    %v638 = vmax.f32 %v616, 0.0
    %v639 = vmax.f32 %v621, 0.0
    %v640 = vmax.f32 %v624, 0.0
    %v641 = vmax.f32 %v629, 0.0
    %v642 = vmax.f32 %v632, 0.0
    %651 = vrot.lane.b32.xlu0 %v635, 64
    %v652 = vpop.permute.xlu0 %651
    %653 = vrot.lane.b32.xlu0 %v636, 64
    %v654 = vpop.permute.xlu0 %653
    %655 = vrot.lane.b32.xlu0 %v637, 64
    %v656 = vpop.permute.xlu0 %655
    %657 = vrot.lane.b32.xlu0 %v638, 64
    %v658 = vpop.permute.xlu0 %657
    %659 = vrot.lane.b32.xlu0 %v639, 64
    %v660 = vpop.permute.xlu0 %659
    %661 = vrot.lane.b32.xlu0 %v640, 64
    %v662 = vpop.permute.xlu0 %661
    %663 = vrot.lane.b32.xlu0 %v641, 64
    %v664 = vpop.permute.xlu0 %663
    %665 = vrot.lane.b32.xlu0 %v642, 64
    %v666 = vpop.permute.xlu0 %665
    %vm675 = vcmask 523264
    %v676 = vsel %vm675, %v465, %v652
    %v677 = vsel %vm675, %v466, %v654
    %v678 = vsel %vm675, %v467, %v656
    %v679 = vsel %vm675, %v468, %v658
    %v680 = vsel %vm675, %v469, %v660
    %v681 = vsel %vm675, %v470, %v662
    %v682 = vsel %vm675, %v471, %v664
    %v683 = vsel %vm675, %v472, %v666
    %684 = vst [vmem:[#allocation5] sm:$0xff] %v676
    %685 = vst [vmem:[#allocation5 + $0x8] sm:$0xff] %v677
    %686 = vst [vmem:[#allocation5 + $0x10] sm:$0xff] %v678
    %687 = vst [vmem:[#allocation5 + $0x18] sm:$0xff] %v679
    %688 = vst [vmem:[#allocation5 + $0x20] sm:$0xff] %v680
    %689 = vst [vmem:[#allocation5 + $0x28] sm:$0xff] %v681
    %690 = vst [vmem:[#allocation5 + $0x30] sm:$0xff] %v682
    %691 = vst [vmem:[#allocation5 + $0x38] sm:$0xff] %v683
    // Predicated region
    $region26: #{tpu_custom_call.1} parent=1 // pred_check
      _
    $region27: #{tpu_custom_call.1} parent=1 // pred_check_branch
      %693 = sbr.rel (0) target = $region29
    $region28: #{tpu_custom_call.1} parent=1 // pred_region
      %s695 = ssub.s32 1024, 1024
      %696 = vsyncadd [#allocation4], %s695
      %s697 = sshll.u32 [#allocation5], 4
      %s698 = int_to_ptr.vmem [resolvable:$true] %s697
      %703 = dma.vmem_to_hbm [thread:$0]  %s698, 1024, %s5, [#allocation4], 128, 128, 8
    $region29: #{tpu_custom_call.1} parent=1 // pred_fallthru
      _
    // Predicated region
    $region30: #{tpu_custom_call.1} parent=1 // pred_check
      _
    $region31: #{tpu_custom_call.1} parent=1 // pred_check_branch
      %705 = sbr.rel (0) target = $region33
    $region32: #{tpu_custom_call.1} parent=1 // pred_region
      %706 = dma.done [#allocation4], 1024
    $region33: #{tpu_custom_call.1} parent=1 // pred_fallthru
      _
    %707 = vsyncpa [#allocation3], 1
    %708 = vsyncpa [#allocation4], 1

</llo_original>
